<compile_context>
chip_gen: v7x
topology: tpu7x:2x2x1
jax: 0.10.0
libtpu: 0.0.40
codegen_flags: <defaults>
</compile_context>

<pallas_src>
import functools

import jax
import jax.numpy as jnp
import numpy as np
from jax.experimental import pallas as pl
from jax.experimental.pallas import tpu as pltpu


def _lstm_fc_kernel(num_layers, seq_len, hidden, batch_pad, compute_dtype,
                    x_ref, *args):
    """Stacked LSTM + final Linear in one kernel invocation.

    args layout:
      [w_ih_T, w_hh_T, bias] * num_layers, fc_w_T, fc_b,   (inputs)
      out_ref,                                             (output)
      seq_buf, gates_buf                                   (VMEM scratch)
    """
    L, T, H, Bp = num_layers, seq_len, hidden, batch_pad
    layer_refs = args[:3 * L]
    fcw_ref, fcb_ref = args[3 * L], args[3 * L + 1]
    out_ref = args[3 * L + 2]
    seq_buf, gates_buf = args[3 * L + 3], args[3 * L + 4]

    h_last = jnp.zeros((Bp, H), jnp.float32)

    for l in range(L):
        w_ih = layer_refs[3 * l][...]      # (D_l, 4H) in compute_dtype
        w_hh = layer_refs[3 * l + 1][...]  # (H, 4H)   in compute_dtype
        bias = layer_refs[3 * l + 2][...]  # (1, 4H)   f32 (= b_ih + b_hh)

        # ---- hoisted input projection: all timesteps in one MXU matmul,
        #      bias folded in once (no per-step broadcast).
        x_in = x_ref[...] if l == 0 else seq_buf[...]        # (T*Bp, D_l) f32
        gates_buf[...] = (
            jnp.dot(x_in.astype(compute_dtype), w_ih,
                    preferred_element_type=jnp.float32) + bias)

        # ---- serial recurrence; h/c live in vregs, only h hits VMEM (seq).
        def step(t, carry):
            h, c = carry
            row = pl.multiple_of(t * Bp, Bp)                  # 8-aligned
            g = gates_buf[pl.ds(row, Bp), :] + jnp.dot(
                h.astype(compute_dtype), w_hh,
                preferred_element_type=jnp.float32)           # (Bp, 4H) f32
            # PyTorch gate order: i, f, g, o. (For real model sizes choose H a
            # multiple of 128 so these lane slices are free views.)
            i_g = jax.nn.sigmoid(g[:, 0 * H:1 * H])
            f_g = jax.nn.sigmoid(g[:, 1 * H:2 * H])
            g_g = jnp.tanh(g[:, 2 * H:3 * H])
            o_g = jax.nn.sigmoid(g[:, 3 * H:4 * H])
            c_new = f_g * c + i_g * g_g
            h_new = o_g * jnp.tanh(c_new)
            seq_buf[pl.ds(row, Bp), :] = h_new                # layer output seq
            return h_new, c_new

        h0 = jnp.zeros((Bp, H), jnp.float32)   # matches torch.zeros h0/c0
        c0 = jnp.zeros((Bp, H), jnp.float32)
        h_last, _ = jax.lax.fori_loop(0, T, step, (h0, c0))

    # Final Linear on the last timestep's hidden state (== out[:, -1, :] @ W^T + b).
    out_ref[...] = (
        jnp.dot(h_last.astype(compute_dtype), fcw_ref[...],
                preferred_element_type=jnp.float32) + fcb_ref[...]
    ).astype(out_ref.dtype)


def lstm_model_forward(x, params, *, hidden_size, num_layers, output_size,
                       matmul_dtype=jnp.float32):
    """Pallas wrapper. x: (B, T, D) float32. params: dict of weights.

    matmul_dtype=jnp.bfloat16 puts the MXU on the bf16 path (v6e/v7x) while
    keeping f32 accumulation and f32 element-wise gate math.
    """
    B, T, D = x.shape
    H, L, O = hidden_size, num_layers, output_size
    Bp = max(8, ((B + 7) // 8) * 8)   # pad batch to a sublane multiple

    # Layout plumbing in XLA (outside the kernel): batch-first -> time-major,
    # pad batch, flatten (T, Bp, D) -> (T*Bp, D) so in-kernel matmuls are 2-D.
    x_tm = jnp.transpose(x, (1, 0, 2))                       # (T, B, D)
    x_tm = jnp.pad(x_tm, ((0, 0), (0, Bp - B), (0, 0)))      # (T, Bp, D)
    x2d = x_tm.reshape(T * Bp, D).astype(jnp.float32)

    inputs = [x2d]
    in_specs = [pl.BlockSpec((T * Bp, D), lambda i: (0, 0))]
    for l in range(L):
        w_ih_T = params[f"w_ih_T_{l}"].astype(matmul_dtype)          # (D_l, 4H)
        w_hh_T = params[f"w_hh_T_{l}"].astype(matmul_dtype)          # (H, 4H)
        bias = params[f"bias_{l}"].reshape(1, 4 * H).astype(jnp.float32)
        inputs += [w_ih_T, w_hh_T, bias]
        in_specs += [
            pl.BlockSpec(tuple(w_ih_T.shape), lambda i: (0, 0)),
            pl.BlockSpec(tuple(w_hh_T.shape), lambda i: (0, 0)),
            pl.BlockSpec((1, 4 * H), lambda i: (0, 0)),
        ]
    fc_w_T = params["fc_w_T"].astype(matmul_dtype)                   # (H, O)
    fc_b = params["fc_b"].reshape(1, O).astype(jnp.float32)
    inputs += [fc_w_T, fc_b]
    in_specs += [pl.BlockSpec((H, O), lambda i: (0, 0)),
                 pl.BlockSpec((1, O), lambda i: (0, 0))]

    out_spec = pl.BlockSpec((Bp, O), lambda i: (0, 0))

    scratch_shapes = [
        pltpu.VMEM((T * Bp, H), jnp.float32),      # layer output sequence (in place)
        pltpu.VMEM((T * Bp, 4 * H), jnp.float32),  # hoisted x-gates (+ bias)
    ]

    # Explicit VMEM budget (v7x physical VMEM is 64 MiB).
    need = sum(int(a.size) * a.dtype.itemsize for a in inputs)
    need += Bp * O * 4                     # output
    need += (T * Bp) * (5 * H) * 4         # scratch
    vmem_limit = int(min(max(2 * need, 32 * 1024 * 1024), 64 * 1024 * 1024))

    kernel = functools.partial(_lstm_fc_kernel, L, T, H, Bp, matmul_dtype)

    out_padded = pl.pallas_call(
        kernel,
        out_shape=jax.ShapeDtypeStruct((Bp, O), x.dtype),
        grid_spec=pltpu.PrefetchScalarGridSpec(
            num_scalar_prefetch=0,
            grid=(1,),
            in_specs=in_specs,
            out_specs=out_spec,
            scratch_shapes=scratch_shapes,
        ),
        compiler_params=pltpu.CompilerParams(
            dimension_semantics=("arbitrary",),
            vmem_limit_bytes=vmem_limit,
        ),
    )(*inputs)
    return out_padded[:B]


def _ref_forward(x, params, *, hidden_size, num_layers,
                 matmul_dtype=jnp.float32):
    """Pure-JAX reference matching torch.nn.LSTM semantics (for validation)."""
    B, T, _ = x.shape
    H = hidden_size

    def mm(a, w):
        return jnp.dot(a.astype(matmul_dtype), w.astype(matmul_dtype),
                       preferred_element_type=jnp.float32)

    seq = x
    for l in range(num_layers):
        w_ih_T = params[f"w_ih_T_{l}"]
        w_hh_T = params[f"w_hh_T_{l}"]
        bias = params[f"bias_{l}"]
        h = jnp.zeros((B, H), jnp.float32)
        c = jnp.zeros((B, H), jnp.float32)
        outs = []
        for t in range(T):
            g = mm(seq[:, t, :], w_ih_T) + mm(h, w_hh_T) + bias
            i = jax.nn.sigmoid(g[:, 0 * H:1 * H])
            f = jax.nn.sigmoid(g[:, 1 * H:2 * H])
            gg = jnp.tanh(g[:, 2 * H:3 * H])
            o = jax.nn.sigmoid(g[:, 3 * H:4 * H])
            c = f * c + i * gg
            h = o * jnp.tanh(c)
            outs.append(h)
        seq = jnp.stack(outs, axis=1)
    return mm(seq[:, -1, :], params["fc_w_T"]) + params["fc_b"]


def init_params(key, input_size, hidden_size, num_layers, output_size):
    """Deterministic init mirroring nn.LSTM / nn.Linear parameter shapes."""
    H = hidden_size
    bound = 1.0 / np.sqrt(H)
    params = {}
    for l in range(num_layers):
        d_in = input_size if l == 0 else H
        key, k1, k2, k3, k4 = jax.random.split(key, 5)
        w_ih = jax.random.uniform(k1, (4 * H, d_in), jnp.float32, -bound, bound)
        w_hh = jax.random.uniform(k2, (4 * H, H), jnp.float32, -bound, bound)
        b_ih = jax.random.uniform(k3, (4 * H,), jnp.float32, -bound, bound)
        b_hh = jax.random.uniform(k4, (4 * H,), jnp.float32, -bound, bound)
        params[f"w_ih_T_{l}"] = w_ih.T            # (d_in, 4H)
        params[f"w_hh_T_{l}"] = w_hh.T            # (H, 4H)
        params[f"bias_{l}"] = b_ih + b_hh         # (4H,)
    key, k1, k2 = jax.random.split(key, 3)
    fc_w = jax.random.uniform(k1, (output_size, H), jnp.float32, -bound, bound)
    fc_b = jax.random.uniform(k2, (output_size,), jnp.float32, -bound, bound)
    params["fc_w_T"] = fc_w.T                     # (H, O)
    params["fc_b"] = fc_b                         # (O,)
    return params


if __name__ == "__main__":
    # Small shapes consistent with the module's forward: x (B, T, input_size)
    B, T = 2, 8
    input_size, hidden_size, num_layers, output_size = 4, 32, 2, 8

    key = jax.random.PRNGKey(0)
    key, xk = jax.random.split(key)
    x = jax.random.normal(xk, (B, T, input_size), jnp.float32)
    params = init_params(key, input_size, hidden_size, num_layers, output_size)

    # f32 path (exact check against the pure-JAX reference).
    out = lstm_model_forward(
        x, params,
        hidden_size=hidden_size, num_layers=num_layers, output_size=output_size,
        matmul_dtype=jnp.float32,
    )
    out = jax.block_until_ready(out)
    ref = _ref_forward(x, params, hidden_size=hidden_size, num_layers=num_layers)
    np.testing.assert_allclose(np.asarray(out), np.asarray(ref),
                               rtol=1e-3, atol=1e-3)

    # bf16 MXU-operand path (recommended for v6e/v7x); checked against a
    # bf16-matched reference.
    out_bf16 = lstm_model_forward(
        x, params,
        hidden_size=hidden_size, num_layers=num_layers, output_size=output_size,
        matmul_dtype=jnp.bfloat16,
    )
    out_bf16 = jax.block_until_ready(out_bf16)
    ref_bf16 = _ref_forward(x, params, hidden_size=hidden_size,
                            num_layers=num_layers, matmul_dtype=jnp.bfloat16)
    np.testing.assert_allclose(np.asarray(out_bf16), np.asarray(ref_bf16),
                               rtol=2e-2, atol=2e-2)

    print("KERNEL_OK")
</pallas_src>

<mosaic_0001>
module attributes {stable_mosaic.version = 11 : i64} {
  func.func @_lstm_fc_kernel(%arg0: i32, %arg1: memref<64x4xf32, #tpu.memory_space<vmem>>, %arg2: memref<4x128xf32, #tpu.memory_space<vmem>>, %arg3: memref<32x128xf32, #tpu.memory_space<vmem>>, %arg4: memref<1x128xf32, #tpu.memory_space<vmem>>, %arg5: memref<32x128xf32, #tpu.memory_space<vmem>>, %arg6: memref<32x128xf32, #tpu.memory_space<vmem>>, %arg7: memref<1x128xf32, #tpu.memory_space<vmem>>, %arg8: memref<32x8xf32, #tpu.memory_space<vmem>>, %arg9: memref<1x8xf32, #tpu.memory_space<vmem>>, %arg10: memref<8x8xf32, #tpu.memory_space<vmem>>, %arg11: memref<64x32xf32, #tpu.memory_space<vmem>>, %arg12: memref<64x128xf32, #tpu.memory_space<vmem>>) attributes {dimension_semantics = [#tpu.dimension_semantics<arbitrary>], iteration_bounds = array<i64: 1>, scalar_prefetch = 0 : i64, scratch_operands = 2 : i64, tpu.core_type = #tpu.core_type<tc>, window_params = [{pipeline_mode = #tpu.pipeline_mode<synchronous>, transform_indices = @transform_0, window_bounds = array<i64: 64, 4>}, {pipeline_mode = #tpu.pipeline_mode<synchronous>, transform_indices = @transform_1, window_bounds = array<i64: 4, 128>}, {pipeline_mode = #tpu.pipeline_mode<synchronous>, transform_indices = @transform_2, window_bounds = array<i64: 32, 128>}, {pipeline_mode = #tpu.pipeline_mode<synchronous>, transform_indices = @transform_3, window_bounds = array<i64: 1, 128>}, {pipeline_mode = #tpu.pipeline_mode<synchronous>, transform_indices = @transform_4, window_bounds = array<i64: 32, 128>}, {pipeline_mode = #tpu.pipeline_mode<synchronous>, transform_indices = @transform_5, window_bounds = array<i64: 32, 128>}, {pipeline_mode = #tpu.pipeline_mode<synchronous>, transform_indices = @transform_6, window_bounds = array<i64: 1, 128>}, {pipeline_mode = #tpu.pipeline_mode<synchronous>, transform_indices = @transform_7, window_bounds = array<i64: 32, 8>}, {pipeline_mode = #tpu.pipeline_mode<synchronous>, transform_indices = @transform_8, window_bounds = array<i64: 1, 8>}, {pipeline_mode = #tpu.pipeline_mode<synchronous>, transform_indices = @transform_9, window_bounds = array<i64: 8, 8>}]} {
    %c0 = arith.constant 0 : index
    %c0_0 = arith.constant 0 : index
    %0 = vector.load %arg2[%c0, %c0_0] : memref<4x128xf32, #tpu.memory_space<vmem>>, vector<4x128xf32>
    %c0_1 = arith.constant 0 : index
    %c0_2 = arith.constant 0 : index
    %1 = vector.load %arg3[%c0_1, %c0_2] : memref<32x128xf32, #tpu.memory_space<vmem>>, vector<32x128xf32>
    %c0_3 = arith.constant 0 : index
    %c0_4 = arith.constant 0 : index
    %2 = vector.load %arg4[%c0_3, %c0_4] : memref<1x128xf32, #tpu.memory_space<vmem>>, vector<1x128xf32>
    %c0_5 = arith.constant 0 : index
    %c0_6 = arith.constant 0 : index
    %3 = vector.load %arg1[%c0_5, %c0_6] : memref<64x4xf32, #tpu.memory_space<vmem>>, vector<64x4xf32>
    %cst = arith.constant dense<0.000000e+00> : vector<64x128xf32>
    %4 = tpu.matmul %3, %0, %cst {dimension_numbers = #tpu.dot_dimension_numbers<[1], [0], [0], [1], [0, 0, 1, 1], [], []>} : vector<64x4xf32>, vector<4x128xf32>, vector<64x128xf32> -> vector<64x128xf32>
    %5 = vector.broadcast %2 : vector<1x128xf32> to vector<64x128xf32>
    %6 = arith.addf %4, %5 : vector<64x128xf32>
    %c0_7 = arith.constant 0 : index
    %c0_8 = arith.constant 0 : index
    %7 = vector.load %arg12[%c0_7, %c0_8] : memref<64x128xf32, #tpu.memory_space<vmem>>, vector<64x128xf32>
    tpu.vector_store %arg12[%c0_7, %c0_8], %6 {strides = array<i32>} : memref<64x128xf32, #tpu.memory_space<vmem>>, vector<64x128xf32>,
    %cst_9 = arith.constant 0.000000e+00 : f32
    %8 = vector.broadcast %cst_9 : f32 to vector<8x32xf32>
    %cst_10 = arith.constant 0.000000e+00 : f32
    %9 = vector.broadcast %cst_10 : f32 to vector<8x32xf32>
    %c0_i32 = arith.constant 0 : i32
    %c8_i32 = arith.constant 8 : i32
    %10 = arith.addi %c0_i32, %c8_i32 : i32
    %c1_i32 = arith.constant 1 : i32
    %11:2 = scf.for %arg13 = %c0_i32 to %10 step %c1_i32 iter_args(%arg14 = %8, %arg15 = %9) -> (vector<8x32xf32>, vector<8x32xf32>)  : i32 {
      %c8_i32_36 = arith.constant 8 : i32
      %30 = arith.muli %arg13, %c8_i32_36 : i32
      %31 = tpu.assume_multiple %30, 8 : i32
      %32 = arith.index_cast %31 : i32 to index
      %c0_37 = arith.constant 0 : index
      %33 = vector.load %arg12[%32, %c0_37] : memref<64x128xf32, #tpu.memory_space<vmem>>, vector<8x128xf32>
      %cst_38 = arith.constant dense<0.000000e+00> : vector<8x128xf32>
      %34 = tpu.matmul %arg14, %1, %cst_38 {dimension_numbers = #tpu.dot_dimension_numbers<[1], [0], [0], [1], [0, 0, 1, 1], [], []>} : vector<8x32xf32>, vector<32x128xf32>, vector<8x128xf32> -> vector<8x128xf32>
      %35 = arith.addf %33, %34 : vector<8x128xf32>
      %36 = vector.extract_strided_slice %35 {offsets = [0, 0], sizes = [8, 32], strides = [1, 1]} : vector<8x128xf32> to vector<8x32xf32>
      %37 = arith.negf %36 : vector<8x32xf32>
      %38 = math.exp %37 : vector<8x32xf32>
      %cst_39 = arith.constant 1.000000e+00 : f32
      %39 = vector.broadcast %cst_39 : f32 to vector<8x32xf32>
      %40 = arith.addf %39, %38 : vector<8x32xf32>
      %41 = arith.divf %39, %40 : vector<8x32xf32>
      %42 = vector.extract_strided_slice %35 {offsets = [0, 32], sizes = [8, 32], strides = [1, 1]} : vector<8x128xf32> to vector<8x32xf32>
      %43 = arith.negf %42 : vector<8x32xf32>
      %44 = math.exp %43 : vector<8x32xf32>
      %cst_40 = arith.constant 1.000000e+00 : f32
      %45 = vector.broadcast %cst_40 : f32 to vector<8x32xf32>
      %46 = arith.addf %45, %44 : vector<8x32xf32>
      %47 = arith.divf %45, %46 : vector<8x32xf32>
      %48 = vector.extract_strided_slice %35 {offsets = [0, 64], sizes = [8, 32], strides = [1, 1]} : vector<8x128xf32> to vector<8x32xf32>
      %49 = math.tanh %48 : vector<8x32xf32>
      %50 = vector.extract_strided_slice %35 {offsets = [0, 96], sizes = [8, 32], strides = [1, 1]} : vector<8x128xf32> to vector<8x32xf32>
      %51 = arith.negf %50 : vector<8x32xf32>
      %52 = math.exp %51 : vector<8x32xf32>
      %cst_41 = arith.constant 1.000000e+00 : f32
      %53 = vector.broadcast %cst_41 : f32 to vector<8x32xf32>
      %54 = arith.addf %53, %52 : vector<8x32xf32>
      %55 = arith.divf %53, %54 : vector<8x32xf32>
      %56 = arith.mulf %47, %arg15 : vector<8x32xf32>
      %57 = arith.mulf %41, %49 : vector<8x32xf32>
      %58 = arith.addf %56, %57 : vector<8x32xf32>
      %59 = math.tanh %58 : vector<8x32xf32>
      %60 = arith.mulf %55, %59 : vector<8x32xf32>
      %61 = arith.index_cast %31 : i32 to index
      %c0_42 = arith.constant 0 : index
      %62 = vector.load %arg11[%61, %c0_42] : memref<64x32xf32, #tpu.memory_space<vmem>>, vector<8x32xf32>
      tpu.vector_store %arg11[%61, %c0_42], %60 {strides = array<i32>} : memref<64x32xf32, #tpu.memory_space<vmem>>, vector<8x32xf32>,
      scf.yield %60, %58 : vector<8x32xf32>, vector<8x32xf32>
    }
    %c8_i32_11 = arith.constant 8 : i32
    %c0_12 = arith.constant 0 : index
    %c0_13 = arith.constant 0 : index
    %12 = vector.load %arg5[%c0_12, %c0_13] : memref<32x128xf32, #tpu.memory_space<vmem>>, vector<32x128xf32>
    %c0_14 = arith.constant 0 : index
    %c0_15 = arith.constant 0 : index
    %13 = vector.load %arg6[%c0_14, %c0_15] : memref<32x128xf32, #tpu.memory_space<vmem>>, vector<32x128xf32>
    %c0_16 = arith.constant 0 : index
    %c0_17 = arith.constant 0 : index
    %14 = vector.load %arg7[%c0_16, %c0_17] : memref<1x128xf32, #tpu.memory_space<vmem>>, vector<1x128xf32>
    %c0_18 = arith.constant 0 : index
    %c0_19 = arith.constant 0 : index
    %15 = vector.load %arg11[%c0_18, %c0_19] : memref<64x32xf32, #tpu.memory_space<vmem>>, vector<64x32xf32>
    %cst_20 = arith.constant dense<0.000000e+00> : vector<64x128xf32>
    %16 = tpu.matmul %15, %12, %cst_20 {dimension_numbers = #tpu.dot_dimension_numbers<[1], [0], [0], [1], [0, 0, 1, 1], [], []>} : vector<64x32xf32>, vector<32x128xf32>, vector<64x128xf32> -> vector<64x128xf32>
    %17 = vector.broadcast %14 : vector<1x128xf32> to vector<64x128xf32>
    %18 = arith.addf %16, %17 : vector<64x128xf32>
    %c0_21 = arith.constant 0 : index
    %c0_22 = arith.constant 0 : index
    %19 = vector.load %arg12[%c0_21, %c0_22] : memref<64x128xf32, #tpu.memory_space<vmem>>, vector<64x128xf32>
    tpu.vector_store %arg12[%c0_21, %c0_22], %18 {strides = array<i32>} : memref<64x128xf32, #tpu.memory_space<vmem>>, vector<64x128xf32>,
    %cst_23 = arith.constant 0.000000e+00 : f32
    %20 = vector.broadcast %cst_23 : f32 to vector<8x32xf32>
    %cst_24 = arith.constant 0.000000e+00 : f32
    %21 = vector.broadcast %cst_24 : f32 to vector<8x32xf32>
    %c0_i32_25 = arith.constant 0 : i32
    %c8_i32_26 = arith.constant 8 : i32
    %22 = arith.addi %c0_i32_25, %c8_i32_26 : i32
    %c1_i32_27 = arith.constant 1 : i32
    %23:2 = scf.for %arg13 = %c0_i32_25 to %22 step %c1_i32_27 iter_args(%arg14 = %20, %arg15 = %21) -> (vector<8x32xf32>, vector<8x32xf32>)  : i32 {
      %c8_i32_36 = arith.constant 8 : i32
      %30 = arith.muli %arg13, %c8_i32_36 : i32
      %31 = tpu.assume_multiple %30, 8 : i32
      %32 = arith.index_cast %31 : i32 to index
      %c0_37 = arith.constant 0 : index
      %33 = vector.load %arg12[%32, %c0_37] : memref<64x128xf32, #tpu.memory_space<vmem>>, vector<8x128xf32>
      %cst_38 = arith.constant dense<0.000000e+00> : vector<8x128xf32>
      %34 = tpu.matmul %arg14, %13, %cst_38 {dimension_numbers = #tpu.dot_dimension_numbers<[1], [0], [0], [1], [0, 0, 1, 1], [], []>} : vector<8x32xf32>, vector<32x128xf32>, vector<8x128xf32> -> vector<8x128xf32>
      %35 = arith.addf %33, %34 : vector<8x128xf32>
      %36 = vector.extract_strided_slice %35 {offsets = [0, 0], sizes = [8, 32], strides = [1, 1]} : vector<8x128xf32> to vector<8x32xf32>
      %37 = arith.negf %36 : vector<8x32xf32>
      %38 = math.exp %37 : vector<8x32xf32>
      %cst_39 = arith.constant 1.000000e+00 : f32
      %39 = vector.broadcast %cst_39 : f32 to vector<8x32xf32>
      %40 = arith.addf %39, %38 : vector<8x32xf32>
      %41 = arith.divf %39, %40 : vector<8x32xf32>
      %42 = vector.extract_strided_slice %35 {offsets = [0, 32], sizes = [8, 32], strides = [1, 1]} : vector<8x128xf32> to vector<8x32xf32>
      %43 = arith.negf %42 : vector<8x32xf32>
      %44 = math.exp %43 : vector<8x32xf32>
      %cst_40 = arith.constant 1.000000e+00 : f32
      %45 = vector.broadcast %cst_40 : f32 to vector<8x32xf32>
      %46 = arith.addf %45, %44 : vector<8x32xf32>
      %47 = arith.divf %45, %46 : vector<8x32xf32>
      %48 = vector.extract_strided_slice %35 {offsets = [0, 64], sizes = [8, 32], strides = [1, 1]} : vector<8x128xf32> to vector<8x32xf32>
      %49 = math.tanh %48 : vector<8x32xf32>
      %50 = vector.extract_strided_slice %35 {offsets = [0, 96], sizes = [8, 32], strides = [1, 1]} : vector<8x128xf32> to vector<8x32xf32>
      %51 = arith.negf %50 : vector<8x32xf32>
      %52 = math.exp %51 : vector<8x32xf32>
      %cst_41 = arith.constant 1.000000e+00 : f32
      %53 = vector.broadcast %cst_41 : f32 to vector<8x32xf32>
      %54 = arith.addf %53, %52 : vector<8x32xf32>
      %55 = arith.divf %53, %54 : vector<8x32xf32>
      %56 = arith.mulf %47, %arg15 : vector<8x32xf32>
      %57 = arith.mulf %41, %49 : vector<8x32xf32>
      %58 = arith.addf %56, %57 : vector<8x32xf32>
      %59 = math.tanh %58 : vector<8x32xf32>
      %60 = arith.mulf %55, %59 : vector<8x32xf32>
      %61 = arith.index_cast %31 : i32 to index
      %c0_42 = arith.constant 0 : index
      %62 = vector.load %arg11[%61, %c0_42] : memref<64x32xf32, #tpu.memory_space<vmem>>, vector<8x32xf32>
      tpu.vector_store %arg11[%61, %c0_42], %60 {strides = array<i32>} : memref<64x32xf32, #tpu.memory_space<vmem>>, vector<8x32xf32>,
      scf.yield %60, %58 : vector<8x32xf32>, vector<8x32xf32>
    }
    %c8_i32_28 = arith.constant 8 : i32
    %c0_29 = arith.constant 0 : index
    %c0_30 = arith.constant 0 : index
    %24 = vector.load %arg8[%c0_29, %c0_30] : memref<32x8xf32, #tpu.memory_space<vmem>>, vector<32x8xf32>
    %cst_31 = arith.constant dense<0.000000e+00> : vector<8x8xf32>
    %25 = tpu.matmul %23#0, %24, %cst_31 {dimension_numbers = #tpu.dot_dimension_numbers<[1], [0], [0], [1], [0, 0, 1, 1], [], []>} : vector<8x32xf32>, vector<32x8xf32>, vector<8x8xf32> -> vector<8x8xf32>
    %c0_32 = arith.constant 0 : index
    %c0_33 = arith.constant 0 : index
    %26 = vector.load %arg9[%c0_32, %c0_33] : memref<1x8xf32, #tpu.memory_space<vmem>>, vector<1x8xf32>
    %27 = vector.broadcast %26 : vector<1x8xf32> to vector<8x8xf32>
    %28 = arith.addf %25, %27 : vector<8x8xf32>
    %c0_34 = arith.constant 0 : index
    %c0_35 = arith.constant 0 : index
    %29 = vector.load %arg10[%c0_34, %c0_35] : memref<8x8xf32, #tpu.memory_space<vmem>>, vector<8x8xf32>
    tpu.vector_store %arg10[%c0_34, %c0_35], %28 {strides = array<i32>} : memref<8x8xf32, #tpu.memory_space<vmem>>, vector<8x8xf32>,
    return
  }
  func.func @transform_0(%arg0: i32) -> (i32, i32) {
    %c0_i32 = arith.constant 0 : i32
    %c0_i32_0 = arith.constant 0 : i32
    %c0_i32_1 = arith.constant 0 : i32
    return %c0_i32, %c0_i32_0 : i32, i32
  }
  func.func @transform_1(%arg0: i32) -> (i32, i32) {
    %c0_i32 = arith.constant 0 : i32
    %c0_i32_0 = arith.constant 0 : i32
    %c0_i32_1 = arith.constant 0 : i32
    return %c0_i32, %c0_i32_0 : i32, i32
  }
  func.func @transform_2(%arg0: i32) -> (i32, i32) {
    %c0_i32 = arith.constant 0 : i32
    %c0_i32_0 = arith.constant 0 : i32
    %c0_i32_1 = arith.constant 0 : i32
    return %c0_i32, %c0_i32_0 : i32, i32
  }
  func.func @transform_3(%arg0: i32) -> (i32, i32) {
    %c0_i32 = arith.constant 0 : i32
    %c0_i32_0 = arith.constant 0 : i32
    %c0_i32_1 = arith.constant 0 : i32
    return %c0_i32, %c0_i32_0 : i32, i32
  }
  func.func @transform_4(%arg0: i32) -> (i32, i32) {
    %c0_i32 = arith.constant 0 : i32
    %c0_i32_0 = arith.constant 0 : i32
    %c0_i32_1 = arith.constant 0 : i32
    return %c0_i32, %c0_i32_0 : i32, i32
  }
  func.func @transform_5(%arg0: i32) -> (i32, i32) {
    %c0_i32 = arith.constant 0 : i32
    %c0_i32_0 = arith.constant 0 : i32
    %c0_i32_1 = arith.constant 0 : i32
    return %c0_i32, %c0_i32_0 : i32, i32
  }
  func.func @transform_6(%arg0: i32) -> (i32, i32) {
    %c0_i32 = arith.constant 0 : i32
    %c0_i32_0 = arith.constant 0 : i32
    %c0_i32_1 = arith.constant 0 : i32
    return %c0_i32, %c0_i32_0 : i32, i32
  }
  func.func @transform_7(%arg0: i32) -> (i32, i32) {
    %c0_i32 = arith.constant 0 : i32
    %c0_i32_0 = arith.constant 0 : i32
    %c0_i32_1 = arith.constant 0 : i32
    return %c0_i32, %c0_i32_0 : i32, i32
  }
  func.func @transform_8(%arg0: i32) -> (i32, i32) {
    %c0_i32 = arith.constant 0 : i32
    %c0_i32_0 = arith.constant 0 : i32
    %c0_i32_1 = arith.constant 0 : i32
    return %c0_i32, %c0_i32_0 : i32, i32
  }
  func.func @transform_9(%arg0: i32) -> (i32, i32) {
    %c0_i32 = arith.constant 0 : i32
    %c0_i32_0 = arith.constant 0 : i32
    %c0_i32_1 = arith.constant 0 : i32
    return %c0_i32, %c0_i32_0 : i32, i32
  }
}

</mosaic_0001>

<llo_original>
// kernel: tpu_custom_call.1
$region0: #{tpu_custom_call.1}
  #allocation0 [shape = 'u32[]', space=smem, size = 0x4, offset = 0x4, fixed_abs, tag = 'smem constant byte address 0x4 - core index']
  #allocation1 [shape = 'u32[144,128]{1,0:T(1,128)}', space=vmem, size = 0x12000, scoped, tag = 'internal scratch']
  #allocation2 [shape = 'f32[64,32]{1,0:T(8,128)}', space=vmem, size = 0x8000, scoped, tag = 'scratch operand']
  #allocation3 [shape = 'f32[64,128]{1,0:T(8,128)}', space=vmem, size = 0x8000, scoped, tag = 'scratch operand']
  %s0 = inlined_call_operand.vmem [shape: f32[64,4], index: 0, kind: input, shape index: {}]
  %s1 = inlined_call_operand.vmem [shape: f32[4,128], index: 1, kind: input, shape index: {}]
  %s2 = inlined_call_operand.vmem [shape: f32[32,128], index: 2, kind: input, shape index: {}]
  %s3 = inlined_call_operand.vmem [shape: f32[1,128], index: 3, kind: input, shape index: {}]
  %s4 = inlined_call_operand.vmem [shape: f32[32,128], index: 4, kind: input, shape index: {}]
  %s5 = inlined_call_operand.vmem [shape: f32[32,128], index: 5, kind: input, shape index: {}]
  %s6 = inlined_call_operand.vmem [shape: f32[1,128], index: 6, kind: input, shape index: {}]
  %s7 = inlined_call_operand.vmem [shape: f32[32,8], index: 7, kind: input, shape index: {}]
  %s8 = inlined_call_operand.vmem [shape: f32[1,8], index: 8, kind: input, shape index: {}]
  %s9 = inlined_call_operand.hbm [shape: f32[8,8], index: 9, kind: output, shape index: {}]
  %s10 = sld [smem:[#allocation0]]
  $region60: #{tpu_custom_call.1} parent=0
    _
  %s12 = ssub.s32 1, %s10
  %s13 = scalar_select 0, %s12, %s10
  $region1: #{tpu_custom_call.1} parent=0
    #allocation4 [shape = 'u8[4096]{0}', space=vmem, size = 0x1000, scoped, tag = 'output window, operand 0, single buffered']
    #allocation5 [shape = 's32[1]{0}', space=sflag, size = 0x4, scoped, tag = 'scoped memory for tpu_custom_call.1']
    %14 = vsyncpa [#allocation5], 0
    // Predicated region
    $region2: #{tpu_custom_call.1} parent=1 // pred_check
      _
    $region3: #{tpu_custom_call.1} parent=1 // pred_check_branch
      %16 = sbr.rel (0) target = $region5
    $region4: #{tpu_custom_call.1} parent=1 // pred_region
      _
    $region5: #{tpu_custom_call.1} parent=1 // pred_fallthru
      _
    // Predicated region
    $region6: #{tpu_custom_call.1} parent=1 // pred_check
      _
    $region7: #{tpu_custom_call.1} parent=1 // pred_check_branch
      %18 = sbr.rel (0) target = $region9
    $region8: #{tpu_custom_call.1} parent=1 // pred_region
      _
    $region9: #{tpu_custom_call.1} parent=1 // pred_fallthru
      _
    // Predicated region
    $region10: #{tpu_custom_call.1} parent=1 // pred_check
      _
    $region11: #{tpu_custom_call.1} parent=1 // pred_check_branch
      %20 = sbr.rel (0) target = $region13
    $region12: #{tpu_custom_call.1} parent=1 // pred_region
      _
    $region13: #{tpu_custom_call.1} parent=1 // pred_fallthru
      _
    // Predicated region
    $region14: #{tpu_custom_call.1} parent=1 // pred_check
      _
    $region15: #{tpu_custom_call.1} parent=1 // pred_check_branch
      %22 = sbr.rel (0) target = $region17
    $region16: #{tpu_custom_call.1} parent=1 // pred_region
      _
    $region17: #{tpu_custom_call.1} parent=1 // pred_fallthru
      _
    // Predicated region
    $region18: #{tpu_custom_call.1} parent=1 // pred_check
      _
    $region19: #{tpu_custom_call.1} parent=1 // pred_check_branch
      %24 = sbr.rel (0) target = $region21
    $region20: #{tpu_custom_call.1} parent=1 // pred_region
      _
    $region21: #{tpu_custom_call.1} parent=1 // pred_fallthru
      _
    // Predicated region
    $region22: #{tpu_custom_call.1} parent=1 // pred_check
      _
    $region23: #{tpu_custom_call.1} parent=1 // pred_check_branch
      %26 = sbr.rel (0) target = $region25
    $region24: #{tpu_custom_call.1} parent=1 // pred_region
      _
    $region25: #{tpu_custom_call.1} parent=1 // pred_fallthru
      _
    // Predicated region
    $region26: #{tpu_custom_call.1} parent=1 // pred_check
      _
    $region27: #{tpu_custom_call.1} parent=1 // pred_check_branch
      %28 = sbr.rel (0) target = $region29
    $region28: #{tpu_custom_call.1} parent=1 // pred_region
      _
    $region29: #{tpu_custom_call.1} parent=1 // pred_fallthru
      _
    // Predicated region
    $region30: #{tpu_custom_call.1} parent=1 // pred_check
      _
    $region31: #{tpu_custom_call.1} parent=1 // pred_check_branch
      %30 = sbr.rel (0) target = $region33
    $region32: #{tpu_custom_call.1} parent=1 // pred_region
      _
    $region33: #{tpu_custom_call.1} parent=1 // pred_fallthru
      _
    // Predicated region
    $region34: #{tpu_custom_call.1} parent=1 // pred_check
      _
    $region35: #{tpu_custom_call.1} parent=1 // pred_check_branch
      %32 = sbr.rel (0) target = $region37
    $region36: #{tpu_custom_call.1} parent=1 // pred_region
      _
    $region37: #{tpu_custom_call.1} parent=1 // pred_fallthru
      _
    %v33 = vld [vmem:[%s1] sm:$0xf]
    %v34 = vld [vmem:[%s2] sm:$0xff]
    %v35 = vld [vmem:[%s2 + $0x8] sm:$0xff]
    %v36 = vld [vmem:[%s2 + $0x10] sm:$0xff]
    %v37 = vld [vmem:[%s2 + $0x18] sm:$0xff]
    %v38 = vld [vmem:[%s3] sm:$0x1]
    %v39 = vld [vmem:[%s0] sm:$0xff]
    %v40 = vld [vmem:[%s0 + $0x8] sm:$0xff]
    %v41 = vld [vmem:[%s0 + $0x10] sm:$0xff]
    %v42 = vld [vmem:[%s0 + $0x18] sm:$0xff]
    %v43 = vld [vmem:[%s0 + $0x20] sm:$0xff]
    %v44 = vld [vmem:[%s0 + $0x28] sm:$0xff]
    %v45 = vld [vmem:[%s0 + $0x30] sm:$0xff]
    %v46 = vld [vmem:[%s0 + $0x38] sm:$0xff]
    %v48 = vlaneseq
    %v49 = vshrl.u32 %v48, 7
    %v50 = vsub.s32 0, %v49
    %v51 = vrot.slane %v38, %v50
    %vm53 = vcmask 31744
    %v55 = vsel %vm53, %v39, 0
    %v58 = vsel %vm53, %v40, 0
    %v61 = vsel %vm53, %v41, 0
    %v64 = vsel %vm53, %v42, 0
    %v67 = vsel %vm53, %v43, 0
    %v70 = vsel %vm53, %v44, 0
    %v73 = vsel %vm53, %v45, 0
    %v76 = vsel %vm53, %v46, 0
    %vm78 = vcmask 1043456
    %v80 = vsel %vm78, %v33, 0
    %82 = vmatprep.subr.mxu0 0.0
    %83 = vmatpush1.msra.mxu0 %v80
    %84 = vmatprep.subr.mxu0 0.0
    %85 = vmatpush1.msra.mxu0 0.0
    %86 = vmatprep.subr.mxu0 0.0
    %87 = vmatpush1.msra.mxu0 0.0
    %88 = vmatprep.subr.mxu0 0.0
    %89 = vmatpush1.msra.mxu0 0.0
    %90 = vmatprep.subr.mxu0 0.0
    %91 = vmatpush1.msra.mxu0 0.0
    %92 = vmatprep.subr.mxu0 0.0
    %93 = vmatpush1.msra.mxu0 0.0
    %94 = vmatprep.subr.mxu0 0.0
    %95 = vmatpush1.msra.mxu0 0.0
    %96 = vmatprep.subr.mxu0 0.0
    %97 = vmatpush1.msra.mxu0 0.0
    %98 = vmatprep.subr.mxu0 0.0
    %99 = vmatpush1.msra.mxu0 0.0
    %100 = vmatprep.subr.mxu0 0.0
    %101 = vmatpush1.msra.mxu0 0.0
    %102 = vmatprep.subr.mxu0 0.0
    %103 = vmatpush1.msra.mxu0 0.0
    %104 = vmatprep.subr.mxu0 0.0
    %105 = vmatpush1.msra.mxu0 0.0
    %106 = vmatprep.subr.mxu0 0.0
    %107 = vmatpush1.msra.mxu0 0.0
    %108 = vmatprep.subr.mxu0 0.0
    %109 = vmatpush1.msra.mxu0 0.0
    %110 = vmatprep.subr.mxu0 0.0
    %111 = vmatpush1.msra.mxu0 0.0
    %112 = vmatprep.subr.mxu0 0.0
    %113 = vmatpush1.msra.mxu0 0.0
    %114 = vmatprep.subr.mxu0 0.0
    %115 = vmatpush1.msra.mxu0 0.0
    %116 = vmatprep.subr.mxu0 0.0
    %117 = vmatpush1.msra.mxu0 0.0
    %118 = vmatprep.subr.mxu0 0.0
    %119 = vmatpush1.msra.mxu0 0.0
    %120 = vmatprep.subr.mxu0 0.0
    %121 = vmatpush1.msra.mxu0 0.0
    %122 = vmatprep.subr.mxu0 0.0
    %123 = vmatpush1.msra.mxu0 0.0
    %124 = vmatprep.subr.mxu0 0.0
    %125 = vmatpush1.msra.mxu0 0.0
    %126 = vmatprep.subr.mxu0 0.0
    %127 = vmatpush1.msra.mxu0 0.0
    %128 = vmatprep.subr.mxu0 0.0
    %129 = vmatpush1.msra.mxu0 0.0
    %130 = vmatprep.subr.mxu0 0.0
    %131 = vmatpush1.msra.mxu0 0.0
    %132 = vmatprep.subr.mxu0 0.0
    %133 = vmatpush1.msra.mxu0 0.0
    %134 = vmatprep.subr.mxu0 0.0
    %135 = vmatpush1.msra.mxu0 0.0
    %136 = vmatprep.subr.mxu0 0.0
    %137 = vmatpush1.msra.mxu0 0.0
    %138 = vmatprep.subr.mxu0 0.0
    %139 = vmatpush1.msra.mxu0 0.0
    %140 = vmatprep.subr.mxu0 0.0
    %141 = vmatpush1.msra.mxu0 0.0
    %142 = vmatprep.subr.mxu0 0.0
    %143 = vmatpush1.msra.mxu0 0.0
    %144 = vmatprep.subr.mxu0 0.0
    %145 = vmatpush1.msra.mxu0 0.0
    %146 = vmatprep.mubr.f32.mxu0 0.0
    %147 = vmatmul.mubr.f32.gmra.mrb[0].mxu0 %v55
    %v148 = vpop.f32.mrb[0].mxu0
    %v149 = vadd.f32 %v51, %v148
    %v150 = vpop.f32.mrb[0].mxu0
    %151 = vmatprep.mubr.f32.mxu0 0.0
    %152 = vmatmul.mubr.f32.gmra.mrb[0].mxu0 %v58
    %v153 = vpop.f32.mrb[0].mxu0
    %v154 = vadd.f32 %v51, %v153
    %v155 = vpop.f32.mrb[0].mxu0
    %156 = vmatprep.mubr.f32.mxu0 0.0
    %157 = vmatmul.mubr.f32.gmra.mrb[0].mxu0 %v61
    %v158 = vpop.f32.mrb[0].mxu0
    %v159 = vadd.f32 %v51, %v158
    %v160 = vpop.f32.mrb[0].mxu0
    %161 = vmatprep.mubr.f32.mxu0 0.0
    %162 = vmatmul.mubr.f32.gmra.mrb[0].mxu0 %v64
    %v163 = vpop.f32.mrb[0].mxu0
    %v164 = vadd.f32 %v51, %v163
    %v165 = vpop.f32.mrb[0].mxu0
    %166 = vmatprep.mubr.f32.mxu0 0.0
    %167 = vmatmul.mubr.f32.gmra.mrb[0].mxu0 %v67
    %v168 = vpop.f32.mrb[0].mxu0
    %v169 = vadd.f32 %v51, %v168
    %v170 = vpop.f32.mrb[0].mxu0
    %171 = vmatprep.mubr.f32.mxu0 0.0
    %172 = vmatmul.mubr.f32.gmra.mrb[0].mxu0 %v70
    %v173 = vpop.f32.mrb[0].mxu0
    %v174 = vadd.f32 %v51, %v173
    %v175 = vpop.f32.mrb[0].mxu0
    %176 = vmatprep.mubr.f32.mxu0 0.0
    %177 = vmatmul.mubr.f32.gmra.mrb[0].mxu0 %v73
    %v178 = vpop.f32.mrb[0].mxu0
    %v179 = vadd.f32 %v51, %v178
    %v180 = vpop.f32.mrb[0].mxu0
    %181 = vmatprep.mubr.f32.mxu0 0.0
    %182 = vmatmul.mubr.f32.gmra.mrb[0].mxu0 %v76
    %v183 = vpop.f32.mrb[0].mxu0
    %v184 = vadd.f32 %v51, %v183
    %v185 = vpop.f32.mrb[0].mxu0
    %186 = vdwg.mxu0
    %187 = vst [vmem:[#allocation3] sm:$0xff] %v149
    %188 = vst [vmem:[#allocation3 + $0x8] sm:$0xff] %v154
    %189 = vst [vmem:[#allocation3 + $0x10] sm:$0xff] %v159
    %190 = vst [vmem:[#allocation3 + $0x18] sm:$0xff] %v164
    %191 = vst [vmem:[#allocation3 + $0x20] sm:$0xff] %v169
    %192 = vst [vmem:[#allocation3 + $0x28] sm:$0xff] %v174
    %193 = vst [vmem:[#allocation3 + $0x30] sm:$0xff] %v179
    %194 = vst [vmem:[#allocation3 + $0x38] sm:$0xff] %v184
    loop: start=0, step=1, limit=8
    $region38: #{tpu_custom_call.1} parent=1 // loop_pre_header
      _
    $region39: #{tpu_custom_call.1} parent=1 // loop_header
      %s196 = sphi 0, %s200
      %p197 = scmp.ge.s32.totalorder %s196, 8
      %v201 = vphi 0.0, %v306
      %v202 = vphi 0.0, %v300
    $region40: #{tpu_custom_call.1} parent=1 // loop_header_branch
      %199 = sbr.rel (%p197) target = $region44
    $region41: #{tpu_custom_call.1} parent=1 // loop_body
      %s203 = smul.u32 %s196, 8
      %s204 = scalar_lea.vmem [#allocation3], %s203
      %v205 = vld [vmem:[%s204] sm:$0xff]
      %207 = vrot.lane.b32.xlu0 %v201, 32
      %v208 = vpop.permute.xlu0 %207
      %vm209 = vcmask 261120
      %v210 = vsel %vm209, %v208, 0
      %212 = vmatprep.subr.mxu0 0.0
      %213 = vmatpush1.msra.mxu0 %v34
      %214 = vmatprep.subr.mxu0 0.0
      %215 = vmatpush1.msra.mxu0 %v35
      %216 = vmatprep.subr.mxu0 0.0
      %217 = vmatpush1.msra.mxu0 %v36
      %218 = vmatprep.subr.mxu0 0.0
      %219 = vmatpush1.msra.mxu0 %v37
      %220 = vmatprep.subr.mxu0 0.0
      %221 = vmatpush1.msra.mxu0 0.0
      %222 = vmatprep.subr.mxu0 0.0
      %223 = vmatpush1.msra.mxu0 0.0
      %224 = vmatprep.subr.mxu0 0.0
      %225 = vmatpush1.msra.mxu0 0.0
      %226 = vmatprep.subr.mxu0 0.0
      %227 = vmatpush1.msra.mxu0 0.0
      %228 = vmatprep.subr.mxu0 0.0
      %229 = vmatpush1.msra.mxu0 0.0
      %230 = vmatprep.subr.mxu0 0.0
      %231 = vmatpush1.msra.mxu0 0.0
      %232 = vmatprep.subr.mxu0 0.0
      %233 = vmatpush1.msra.mxu0 0.0
      %234 = vmatprep.subr.mxu0 0.0
      %235 = vmatpush1.msra.mxu0 0.0
      %236 = vmatprep.subr.mxu0 0.0
      %237 = vmatpush1.msra.mxu0 0.0
      %238 = vmatprep.subr.mxu0 0.0
      %239 = vmatpush1.msra.mxu0 0.0
      %240 = vmatprep.subr.mxu0 0.0
      %241 = vmatpush1.msra.mxu0 0.0
      %242 = vmatprep.subr.mxu0 0.0
      %243 = vmatpush1.msra.mxu0 0.0
      %244 = vmatprep.subr.mxu0 0.0
      %245 = vmatpush1.msra.mxu0 0.0
      %246 = vmatprep.subr.mxu0 0.0
      %247 = vmatpush1.msra.mxu0 0.0
      %248 = vmatprep.subr.mxu0 0.0
      %249 = vmatpush1.msra.mxu0 0.0
      %250 = vmatprep.subr.mxu0 0.0
      %251 = vmatpush1.msra.mxu0 0.0
      %252 = vmatprep.subr.mxu0 0.0
      %253 = vmatpush1.msra.mxu0 0.0
      %254 = vmatprep.subr.mxu0 0.0
      %255 = vmatpush1.msra.mxu0 0.0
      %256 = vmatprep.subr.mxu0 0.0
      %257 = vmatpush1.msra.mxu0 0.0
      %258 = vmatprep.subr.mxu0 0.0
      %259 = vmatpush1.msra.mxu0 0.0
      %260 = vmatprep.subr.mxu0 0.0
      %261 = vmatpush1.msra.mxu0 0.0
      %262 = vmatprep.subr.mxu0 0.0
      %263 = vmatpush1.msra.mxu0 0.0
      %264 = vmatprep.subr.mxu0 0.0
      %265 = vmatpush1.msra.mxu0 0.0
      %266 = vmatprep.subr.mxu0 0.0
      %267 = vmatpush1.msra.mxu0 0.0
      %268 = vmatprep.subr.mxu0 0.0
      %269 = vmatpush1.msra.mxu0 0.0
      %270 = vmatprep.subr.mxu0 0.0
      %271 = vmatpush1.msra.mxu0 0.0
      %272 = vmatprep.subr.mxu0 0.0
      %273 = vmatpush1.msra.mxu0 0.0
      %274 = vmatprep.subr.mxu0 0.0
      %275 = vmatpush1.msra.mxu0 0.0
      %276 = vmatprep.mubr.f32.mxu0 0.0
      %277 = vmatmul.mubr.f32.gmra.mrb[0].mxu0 %v210
      %v278 = vpop.f32.mrb[0].mxu0
      %v279 = vadd.f32 0.0, %v278
      %v280 = vpop.f32.mrb[0].mxu0
      %281 = vdwg.mxu0
      %v282 = vadd.f32 %v205, %v279
      %v283 = vxor.u32 %v282, 2147483648
      %v284 = vmul.f32 %v283, 1.442695
      %v285 = vpow.pop %v284
      %v286 = vadd.f32 %v285, 1.0
      %v287 = vrcp.pop %v286
      %v288 = vmul.f32 1.0, %v287
      %v289 = vtanh.pop %v282
      %v290 = vmul.f32 %v288, %v202
      %292 = vrot.lane.b32.xlu0 %v289, 64
      %v293 = vpop.permute.xlu0 %292
      %v295 = vmul.f32 %v288, %v293
      %297 = vrot.lane.b32.xlu0 %v295, 32
      %v298 = vpop.permute.xlu0 %297
      %v300 = vadd.f32 %v290, %v298
      %v301 = vtanh.pop %v300
      %303 = vrot.lane.b32.xlu0 %v301, 64
      %v304 = vpop.permute.xlu0 %303
      %v306 = vmul.f32 %v288, %v304
      %308 = vrot.lane.b32.xlu0 %v306, 32
      %v309 = vpop.permute.xlu0 %308
      %s311 = scalar_lea.vmem [#allocation2], %s203
      %312 = vst.msk [vmem:[%s311] sm:$0xff] %vm209, %v309
    $region42: #{tpu_custom_call.1} parent=1 // loop_footer
      %s200 = sadd.s32 1, %s196
    $region43: #{tpu_custom_call.1} parent=1 // loop_footer_branch
      %195 = sbr.rel target = $region39
    $region44: #{tpu_custom_call.1} parent=1 // loop_exit
      _
    %v313 = vld [vmem:[%s4] sm:$0xff]
    %v314 = vld [vmem:[%s4 + $0x8] sm:$0xff]
    %v315 = vld [vmem:[%s4 + $0x10] sm:$0xff]
    %v316 = vld [vmem:[%s4 + $0x18] sm:$0xff]
    %v317 = vld [vmem:[%s5] sm:$0xff]
    %v318 = vld [vmem:[%s5 + $0x8] sm:$0xff]
    %v319 = vld [vmem:[%s5 + $0x10] sm:$0xff]
    %v320 = vld [vmem:[%s5 + $0x18] sm:$0xff]
    %v321 = vld [vmem:[%s6] sm:$0x1]
    %v322 = vld [vmem:[#allocation2] sm:$0xff]
    %v323 = vld [vmem:[#allocation2 + $0x8] sm:$0xff]
    %v324 = vld [vmem:[#allocation2 + $0x10] sm:$0xff]
    %v325 = vld [vmem:[#allocation2 + $0x18] sm:$0xff]
    %v326 = vld [vmem:[#allocation2 + $0x20] sm:$0xff]
    %v327 = vld [vmem:[#allocation2 + $0x28] sm:$0xff]
    %v328 = vld [vmem:[#allocation2 + $0x30] sm:$0xff]
    %v329 = vld [vmem:[#allocation2 + $0x38] sm:$0xff]
    %v331 = vlaneseq
    %v332 = vshrl.u32 %v331, 7
    %v333 = vsub.s32 0, %v332
    %v334 = vrot.slane %v321, %v333
    %vm336 = vcmask 261120
    %v338 = vsel %vm336, %v322, 0
    %v341 = vsel %vm336, %v323, 0
    %v344 = vsel %vm336, %v324, 0
    %v347 = vsel %vm336, %v325, 0
    %v350 = vsel %vm336, %v326, 0
    %v353 = vsel %vm336, %v327, 0
    %v356 = vsel %vm336, %v328, 0
    %v359 = vsel %vm336, %v329, 0
    %361 = vmatprep.subr.mxu0 0.0
    %362 = vmatpush1.msra.mxu0 %v313
    %363 = vmatprep.subr.mxu0 0.0
    %364 = vmatpush1.msra.mxu0 %v314
    %365 = vmatprep.subr.mxu0 0.0
    %366 = vmatpush1.msra.mxu0 %v315
    %367 = vmatprep.subr.mxu0 0.0
    %368 = vmatpush1.msra.mxu0 %v316
    %369 = vmatprep.subr.mxu0 0.0
    %370 = vmatpush1.msra.mxu0 0.0
    %371 = vmatprep.subr.mxu0 0.0
    %372 = vmatpush1.msra.mxu0 0.0
    %373 = vmatprep.subr.mxu0 0.0
    %374 = vmatpush1.msra.mxu0 0.0
    %375 = vmatprep.subr.mxu0 0.0
    %376 = vmatpush1.msra.mxu0 0.0
    %377 = vmatprep.subr.mxu0 0.0
    %378 = vmatpush1.msra.mxu0 0.0
    %379 = vmatprep.subr.mxu0 0.0
    %380 = vmatpush1.msra.mxu0 0.0
    %381 = vmatprep.subr.mxu0 0.0
    %382 = vmatpush1.msra.mxu0 0.0
    %383 = vmatprep.subr.mxu0 0.0
    %384 = vmatpush1.msra.mxu0 0.0
    %385 = vmatprep.subr.mxu0 0.0
    %386 = vmatpush1.msra.mxu0 0.0
    %387 = vmatprep.subr.mxu0 0.0
    %388 = vmatpush1.msra.mxu0 0.0
    %389 = vmatprep.subr.mxu0 0.0
    %390 = vmatpush1.msra.mxu0 0.0
    %391 = vmatprep.subr.mxu0 0.0
    %392 = vmatpush1.msra.mxu0 0.0
    %393 = vmatprep.subr.mxu0 0.0
    %394 = vmatpush1.msra.mxu0 0.0
    %395 = vmatprep.subr.mxu0 0.0
    %396 = vmatpush1.msra.mxu0 0.0
    %397 = vmatprep.subr.mxu0 0.0
    %398 = vmatpush1.msra.mxu0 0.0
    %399 = vmatprep.subr.mxu0 0.0
    %400 = vmatpush1.msra.mxu0 0.0
    %401 = vmatprep.subr.mxu0 0.0
    %402 = vmatpush1.msra.mxu0 0.0
    %403 = vmatprep.subr.mxu0 0.0
    %404 = vmatpush1.msra.mxu0 0.0
    %405 = vmatprep.subr.mxu0 0.0
    %406 = vmatpush1.msra.mxu0 0.0
    %407 = vmatprep.subr.mxu0 0.0
    %408 = vmatpush1.msra.mxu0 0.0
    %409 = vmatprep.subr.mxu0 0.0
    %410 = vmatpush1.msra.mxu0 0.0
    %411 = vmatprep.subr.mxu0 0.0
    %412 = vmatpush1.msra.mxu0 0.0
    %413 = vmatprep.subr.mxu0 0.0
    %414 = vmatpush1.msra.mxu0 0.0
    %415 = vmatprep.subr.mxu0 0.0
    %416 = vmatpush1.msra.mxu0 0.0
    %417 = vmatprep.subr.mxu0 0.0
    %418 = vmatpush1.msra.mxu0 0.0
    %419 = vmatprep.subr.mxu0 0.0
    %420 = vmatpush1.msra.mxu0 0.0
    %421 = vmatprep.subr.mxu0 0.0
    %422 = vmatpush1.msra.mxu0 0.0
    %423 = vmatprep.subr.mxu0 0.0
    %424 = vmatpush1.msra.mxu0 0.0
    %425 = vmatprep.mubr.f32.mxu0 0.0
    %426 = vmatmul.mubr.f32.gmra.mrb[0].mxu0 %v338
    %v427 = vpop.f32.mrb[0].mxu0
    %v428 = vadd.f32 %v334, %v427
    %v429 = vpop.f32.mrb[0].mxu0
    %430 = vmatprep.mubr.f32.mxu0 0.0
    %431 = vmatmul.mubr.f32.gmra.mrb[0].mxu0 %v341
    %v432 = vpop.f32.mrb[0].mxu0
    %v433 = vadd.f32 %v334, %v432
    %v434 = vpop.f32.mrb[0].mxu0
    %435 = vmatprep.mubr.f32.mxu0 0.0
    %436 = vmatmul.mubr.f32.gmra.mrb[0].mxu0 %v344
    %v437 = vpop.f32.mrb[0].mxu0
    %v438 = vadd.f32 %v334, %v437
    %v439 = vpop.f32.mrb[0].mxu0
    %440 = vmatprep.mubr.f32.mxu0 0.0
    %441 = vmatmul.mubr.f32.gmra.mrb[0].mxu0 %v347
    %v442 = vpop.f32.mrb[0].mxu0
    %v443 = vadd.f32 %v334, %v442
    %v444 = vpop.f32.mrb[0].mxu0
    %445 = vmatprep.mubr.f32.mxu0 0.0
    %446 = vmatmul.mubr.f32.gmra.mrb[0].mxu0 %v350
    %v447 = vpop.f32.mrb[0].mxu0
    %v448 = vadd.f32 %v334, %v447
    %v449 = vpop.f32.mrb[0].mxu0
    %450 = vmatprep.mubr.f32.mxu0 0.0
    %451 = vmatmul.mubr.f32.gmra.mrb[0].mxu0 %v353
    %v452 = vpop.f32.mrb[0].mxu0
    %v453 = vadd.f32 %v334, %v452
    %v454 = vpop.f32.mrb[0].mxu0
    %455 = vmatprep.mubr.f32.mxu0 0.0
    %456 = vmatmul.mubr.f32.gmra.mrb[0].mxu0 %v356
    %v457 = vpop.f32.mrb[0].mxu0
    %v458 = vadd.f32 %v334, %v457
    %v459 = vpop.f32.mrb[0].mxu0
    %460 = vmatprep.mubr.f32.mxu0 0.0
    %461 = vmatmul.mubr.f32.gmra.mrb[0].mxu0 %v359
    %v462 = vpop.f32.mrb[0].mxu0
    %v463 = vadd.f32 %v334, %v462
    %v464 = vpop.f32.mrb[0].mxu0
    %465 = vdwg.mxu0
    %466 = vst [vmem:[#allocation3] sm:$0xff] %v428
    %467 = vst [vmem:[#allocation3 + $0x8] sm:$0xff] %v433
    %468 = vst [vmem:[#allocation3 + $0x10] sm:$0xff] %v438
    %469 = vst [vmem:[#allocation3 + $0x18] sm:$0xff] %v443
    %470 = vst [vmem:[#allocation3 + $0x20] sm:$0xff] %v448
    %471 = vst [vmem:[#allocation3 + $0x28] sm:$0xff] %v453
    %472 = vst [vmem:[#allocation3 + $0x30] sm:$0xff] %v458
    %473 = vst [vmem:[#allocation3 + $0x38] sm:$0xff] %v463
    loop: start=0, step=1, limit=8
    $region45: #{tpu_custom_call.1} parent=1 // loop_pre_header
      _
    $region46: #{tpu_custom_call.1} parent=1 // loop_header
      %s475 = sphi 0, %s479
      %p476 = scmp.ge.s32.totalorder %s475, 8
      %v480 = vphi 0.0, %v584
      %v481 = vphi 0.0, %v578
    $region47: #{tpu_custom_call.1} parent=1 // loop_header_branch
      %478 = sbr.rel (%p476) target = $region51
    $region48: #{tpu_custom_call.1} parent=1 // loop_body
      %s482 = smul.u32 %s475, 8
      %s483 = scalar_lea.vmem [#allocation3], %s482
      %v484 = vld [vmem:[%s483] sm:$0xff]
      %486 = vrot.lane.b32.xlu0 %v480, 32
      %v487 = vpop.permute.xlu0 %486
      %v488 = vsel %vm336, %v487, 0
      %490 = vmatprep.subr.mxu0 0.0
      %491 = vmatpush1.msra.mxu0 %v317
      %492 = vmatprep.subr.mxu0 0.0
      %493 = vmatpush1.msra.mxu0 %v318
      %494 = vmatprep.subr.mxu0 0.0
      %495 = vmatpush1.msra.mxu0 %v319
      %496 = vmatprep.subr.mxu0 0.0
      %497 = vmatpush1.msra.mxu0 %v320
      %498 = vmatprep.subr.mxu0 0.0
      %499 = vmatpush1.msra.mxu0 0.0
      %500 = vmatprep.subr.mxu0 0.0
      %501 = vmatpush1.msra.mxu0 0.0
      %502 = vmatprep.subr.mxu0 0.0
      %503 = vmatpush1.msra.mxu0 0.0
      %504 = vmatprep.subr.mxu0 0.0
      %505 = vmatpush1.msra.mxu0 0.0
      %506 = vmatprep.subr.mxu0 0.0
      %507 = vmatpush1.msra.mxu0 0.0
      %508 = vmatprep.subr.mxu0 0.0
      %509 = vmatpush1.msra.mxu0 0.0
      %510 = vmatprep.subr.mxu0 0.0
      %511 = vmatpush1.msra.mxu0 0.0
      %512 = vmatprep.subr.mxu0 0.0
      %513 = vmatpush1.msra.mxu0 0.0
      %514 = vmatprep.subr.mxu0 0.0
      %515 = vmatpush1.msra.mxu0 0.0
      %516 = vmatprep.subr.mxu0 0.0
      %517 = vmatpush1.msra.mxu0 0.0
      %518 = vmatprep.subr.mxu0 0.0
      %519 = vmatpush1.msra.mxu0 0.0
      %520 = vmatprep.subr.mxu0 0.0
      %521 = vmatpush1.msra.mxu0 0.0
      %522 = vmatprep.subr.mxu0 0.0
      %523 = vmatpush1.msra.mxu0 0.0
      %524 = vmatprep.subr.mxu0 0.0
      %525 = vmatpush1.msra.mxu0 0.0
      %526 = vmatprep.subr.mxu0 0.0
      %527 = vmatpush1.msra.mxu0 0.0
      %528 = vmatprep.subr.mxu0 0.0
      %529 = vmatpush1.msra.mxu0 0.0
      %530 = vmatprep.subr.mxu0 0.0
      %531 = vmatpush1.msra.mxu0 0.0
      %532 = vmatprep.subr.mxu0 0.0
      %533 = vmatpush1.msra.mxu0 0.0
      %534 = vmatprep.subr.mxu0 0.0
      %535 = vmatpush1.msra.mxu0 0.0
      %536 = vmatprep.subr.mxu0 0.0
      %537 = vmatpush1.msra.mxu0 0.0
      %538 = vmatprep.subr.mxu0 0.0
      %539 = vmatpush1.msra.mxu0 0.0
      %540 = vmatprep.subr.mxu0 0.0
      %541 = vmatpush1.msra.mxu0 0.0
      %542 = vmatprep.subr.mxu0 0.0
      %543 = vmatpush1.msra.mxu0 0.0
      %544 = vmatprep.subr.mxu0 0.0
      %545 = vmatpush1.msra.mxu0 0.0
      %546 = vmatprep.subr.mxu0 0.0
      %547 = vmatpush1.msra.mxu0 0.0
      %548 = vmatprep.subr.mxu0 0.0
      %549 = vmatpush1.msra.mxu0 0.0
      %550 = vmatprep.subr.mxu0 0.0
      %551 = vmatpush1.msra.mxu0 0.0
      %552 = vmatprep.subr.mxu0 0.0
      %553 = vmatpush1.msra.mxu0 0.0
      %554 = vmatprep.mubr.f32.mxu0 0.0
      %555 = vmatmul.mubr.f32.gmra.mrb[0].mxu0 %v488
      %v556 = vpop.f32.mrb[0].mxu0
      %v557 = vadd.f32 0.0, %v556
      %v558 = vpop.f32.mrb[0].mxu0
      %559 = vdwg.mxu0
      %v560 = vadd.f32 %v484, %v557
      %v561 = vxor.u32 %v560, 2147483648
      %v562 = vmul.f32 %v561, 1.442695
      %v563 = vpow.pop %v562
      %v564 = vadd.f32 %v563, 1.0
      %v565 = vrcp.pop %v564
      %v566 = vmul.f32 1.0, %v565
      %v567 = vtanh.pop %v560
      %v568 = vmul.f32 %v566, %v481
      %570 = vrot.lane.b32.xlu0 %v567, 64
      %v571 = vpop.permute.xlu0 %570
      %v573 = vmul.f32 %v566, %v571
      %575 = vrot.lane.b32.xlu0 %v573, 32
      %v576 = vpop.permute.xlu0 %575
      %v578 = vadd.f32 %v568, %v576
      %v579 = vtanh.pop %v578
      %581 = vrot.lane.b32.xlu0 %v579, 64
      %v582 = vpop.permute.xlu0 %581
      %v584 = vmul.f32 %v566, %v582
      %586 = vrot.lane.b32.xlu0 %v584, 32
      %v587 = vpop.permute.xlu0 %586
      %s589 = scalar_lea.vmem [#allocation2], %s482
      %590 = vst.msk [vmem:[%s589] sm:$0xff] %vm336, %v587
    $region49: #{tpu_custom_call.1} parent=1 // loop_footer
      %s479 = sadd.s32 1, %s475
    $region50: #{tpu_custom_call.1} parent=1 // loop_footer_branch
      %474 = sbr.rel target = $region46
    $region51: #{tpu_custom_call.1} parent=1 // loop_exit
      _
    %v591 = vld [vmem:[%s7] sm:$0xff]
    %v592 = vld [vmem:[%s7 + $0x8] sm:$0xff]
    %v593 = vld [vmem:[%s7 + $0x10] sm:$0xff]
    %v594 = vld [vmem:[%s7 + $0x18] sm:$0xff]
    %v595 = vld [vmem:[%s8] sm:$0x1]
    %v597 = vlaneseq
    %v598 = vshrl.u32 %v597, 7
    %v599 = vsub.s32 0, %v598
    %v600 = vrot.slane %v595, %v599
    %603 = vrot.lane.b32.xlu0 %v480, 32
    %v604 = vpop.permute.xlu0 %603
    %v605 = vsel %vm336, %v604, 0
    %607 = vmatprep.subr.mxu0 0.0
    %608 = vmatpush1.msra.mxu0 %v591
    %609 = vmatprep.subr.mxu0 0.0
    %610 = vmatpush1.msra.mxu0 %v592
    %611 = vmatprep.subr.mxu0 0.0
    %612 = vmatpush1.msra.mxu0 %v593
    %613 = vmatprep.subr.mxu0 0.0
    %614 = vmatpush1.msra.mxu0 %v594
    %615 = vmatprep.subr.mxu0 0.0
    %616 = vmatpush1.msra.mxu0 0.0
    %617 = vmatprep.subr.mxu0 0.0
    %618 = vmatpush1.msra.mxu0 0.0
    %619 = vmatprep.subr.mxu0 0.0
    %620 = vmatpush1.msra.mxu0 0.0
    %621 = vmatprep.subr.mxu0 0.0
    %622 = vmatpush1.msra.mxu0 0.0
    %623 = vmatprep.subr.mxu0 0.0
    %624 = vmatpush1.msra.mxu0 0.0
    %625 = vmatprep.subr.mxu0 0.0
    %626 = vmatpush1.msra.mxu0 0.0
    %627 = vmatprep.subr.mxu0 0.0
    %628 = vmatpush1.msra.mxu0 0.0
    %629 = vmatprep.subr.mxu0 0.0
    %630 = vmatpush1.msra.mxu0 0.0
    %631 = vmatprep.subr.mxu0 0.0
    %632 = vmatpush1.msra.mxu0 0.0
    %633 = vmatprep.subr.mxu0 0.0
    %634 = vmatpush1.msra.mxu0 0.0
    %635 = vmatprep.subr.mxu0 0.0
    %636 = vmatpush1.msra.mxu0 0.0
    %637 = vmatprep.subr.mxu0 0.0
    %638 = vmatpush1.msra.mxu0 0.0
    %639 = vmatprep.subr.mxu0 0.0
    %640 = vmatpush1.msra.mxu0 0.0
    %641 = vmatprep.subr.mxu0 0.0
    %642 = vmatpush1.msra.mxu0 0.0
    %643 = vmatprep.subr.mxu0 0.0
    %644 = vmatpush1.msra.mxu0 0.0
    %645 = vmatprep.subr.mxu0 0.0
    %646 = vmatpush1.msra.mxu0 0.0
    %647 = vmatprep.subr.mxu0 0.0
    %648 = vmatpush1.msra.mxu0 0.0
    %649 = vmatprep.subr.mxu0 0.0
    %650 = vmatpush1.msra.mxu0 0.0
    %651 = vmatprep.subr.mxu0 0.0
    %652 = vmatpush1.msra.mxu0 0.0
    %653 = vmatprep.subr.mxu0 0.0
    %654 = vmatpush1.msra.mxu0 0.0
    %655 = vmatprep.subr.mxu0 0.0
    %656 = vmatpush1.msra.mxu0 0.0
    %657 = vmatprep.subr.mxu0 0.0
    %658 = vmatpush1.msra.mxu0 0.0
    %659 = vmatprep.subr.mxu0 0.0
    %660 = vmatpush1.msra.mxu0 0.0
    %661 = vmatprep.subr.mxu0 0.0
    %662 = vmatpush1.msra.mxu0 0.0
    %663 = vmatprep.subr.mxu0 0.0
    %664 = vmatpush1.msra.mxu0 0.0
    %665 = vmatprep.subr.mxu0 0.0
    %666 = vmatpush1.msra.mxu0 0.0
    %667 = vmatprep.subr.mxu0 0.0
    %668 = vmatpush1.msra.mxu0 0.0
    %669 = vmatprep.subr.mxu0 0.0
    %670 = vmatpush1.msra.mxu0 0.0
    %671 = vmatprep.mubr.f32.mxu0 0.0
    %672 = vmatmul.mubr.f32.gmra.mrb[0].mxu0 %v605
    %v673 = vpop.f32.mrb[0].mxu0
    %v674 = vadd.f32 %v600, %v673
    %v675 = vpop.f32.mrb[0].mxu0
    %676 = vdwg.mxu0
    %vm677 = vcmask 64512
    %678 = vst.msk [vmem:[#allocation4] sm:$0xff] %vm677, %v674
    // Predicated region
    $region52: #{tpu_custom_call.1} parent=1 // pred_check
      _
    $region53: #{tpu_custom_call.1} parent=1 // pred_check_branch
      %680 = sbr.rel (0) target = $region55
    $region54: #{tpu_custom_call.1} parent=1 // pred_region
      %s682 = ssub.s32 128, 128
      %683 = vsyncadd [#allocation5], %s682
      %s685 = sshll.u32 [#allocation4], 4
      %s686 = int_to_ptr.vmem [resolvable:$true] %s685
      %688 = dma.vmem_to_hbm [thread:$0]  %s686, 128, %s9, [#allocation5]
    $region55: #{tpu_custom_call.1} parent=1 // pred_fallthru
      _
    // Predicated region
    $region56: #{tpu_custom_call.1} parent=1 // pred_check
      _
    $region57: #{tpu_custom_call.1} parent=1 // pred_check_branch
      %690 = sbr.rel (0) target = $region59
    $region58: #{tpu_custom_call.1} parent=1 // pred_region
      %691 = dma.done [#allocation5], 128
    $region59: #{tpu_custom_call.1} parent=1 // pred_fallthru
      _
    %692 = vsyncpa [#allocation5], 1

</llo_original>
